<compile_context>
chip_gen: v5e
topology: v5e:2x2
jax: 0.10.0
libtpu: 0.0.40
codegen_flags: <defaults>
</compile_context>

<pallas_src>
import math
import functools

import jax
import jax.numpy as jnp
from jax.experimental import pallas as pl
from jax.experimental.pallas import tpu as pltpu


def _round_up(x: int, m: int) -> int:
    return ((x + m - 1) // m) * m


# ------------------------------------------------------------------ kernels --

def _resident_kernel(*refs, has_bias):
    """Weight fully resident in VMEM; 1-D grid over M tiles.

    x_ref : (TM, K_pad)   input dtype (cast to compute dtype in-kernel; x is
                          read from HBM exactly once, so no wrapper pre-pass)
    w_ref : (K_pad, N_pad) compute dtype (bf16), constant index map (resident)
    b_ref : (1, N_pad)    float32  (only present when has_bias)
    o_ref : (TM, N_pad)   output dtype
    """
    if has_bias:
        x_ref, w_ref, b_ref, o_ref = refs
    else:
        x_ref, w_ref, o_ref = refs
        b_ref = None

    acc = jnp.dot(x_ref[...].astype(w_ref.dtype), w_ref[...],
                  preferred_element_type=jnp.float32)
    if has_bias:
        acc = acc + b_ref[...]            # (1, N_pad) broadcasts over TM rows
    o_ref[...] = acc.astype(o_ref.dtype)


def _tiled_kernel(*refs, has_bias):
    """General 3-D grid (M/TM, N/TN, K/TK), f32 VMEM scratch accumulator."""
    if has_bias:
        x_ref, w_ref, b_ref, o_ref, acc_ref = refs
    else:
        x_ref, w_ref, o_ref, acc_ref = refs
        b_ref = None

    k = pl.program_id(2)

    @pl.when(k == 0)
    def _():
        if has_bias:
            # Fold bias into the accumulator init (free epilogue add).
            acc_ref[...] = jnp.broadcast_to(b_ref[...], acc_ref.shape)
        else:
            acc_ref[...] = jnp.zeros_like(acc_ref)

    # bf16 x bf16 -> f32 accumulate: native single-pass MXU path.
    acc_ref[...] += jnp.dot(x_ref[...], w_ref[...],
                            preferred_element_type=jnp.float32)

    @pl.when(k == pl.num_programs(2) - 1)
    def _():
        o_ref[...] = acc_ref[...].astype(o_ref.dtype)


# ------------------------------------------------------------------ wrapper --

class LinearPallas:
    """JAX/Pallas equivalent of the PyTorch `Linear` wrapper around nn.Linear."""

    # Weight-resident path is used when the bf16 (K_pad, N_pad) weight fits
    # this budget per buffer (Pallas double-buffers -> 2x in VMEM).
    _W_RESIDENT_BYTES = 4 * 1024 * 1024
    # Budget for the double-buffered x + out tiles in the resident path.
    _XO_BUDGET_BYTES = 14 * 1024 * 1024

    def __init__(self, n_neurons, input_shape=None, input_size=None, bias=True,
                 combine_dims=False, compute_dtype=jnp.bfloat16, key=None):
        if input_shape is None and input_size is None:
            raise ValueError("Expected one of input_shape or input_size")
        self.combine_dims = combine_dims
        if input_size is None:
            input_size = input_shape[-1]
            if len(input_shape) == 4 and self.combine_dims:
                input_size = input_shape[2] * input_shape[3]
        self.n_neurons = int(n_neurons)
        self.input_size = int(input_size)
        self.compute_dtype = compute_dtype
        self.has_bias = bool(bias)

        # torch.nn.Linear default init: U(-1/sqrt(fan_in), 1/sqrt(fan_in)).
        key = jax.random.PRNGKey(42) if key is None else key
        kw, kb = jax.random.split(key)
        bound = 1.0 / math.sqrt(self.input_size)
        # PyTorch weight layout: (n_neurons, input_size)
        self.weight = jax.random.uniform(
            kw, (self.n_neurons, self.input_size), minval=-bound, maxval=bound,
            dtype=jnp.float32)
        if self.has_bias:
            self.bias = jax.random.uniform(
                kb, (self.n_neurons,), minval=-bound, maxval=bound,
                dtype=jnp.float32)
        else:
            self.bias = jnp.zeros((self.n_neurons,), dtype=jnp.float32)

        # -------- one-time weight/bias preparation (hoisted out of __call__) --
        K_pad = _round_up(self.input_size, 128)
        N_pad = _round_up(self.n_neurons, 128)
        w_kn = jnp.transpose(self.weight)                     # (K, N)
        if (K_pad, N_pad) != w_kn.shape:
            w_kn = jnp.pad(w_kn, ((0, K_pad - self.input_size),
                                  (0, N_pad - self.n_neurons)))
        self._w_prepared = w_kn.astype(self.compute_dtype)    # (K_pad, N_pad) bf16
        if self.has_bias:
            self._b_prepared = jnp.pad(
                self.bias, (0, N_pad - self.n_neurons)
            ).reshape(1, N_pad).astype(jnp.float32)           # (1, N_pad) f32
        else:
            self._b_prepared = None
        self._k_pad = K_pad
        self._n_pad = N_pad

    # ------------------------------------------------------------------------
    def __call__(self, x, *, out_dtype=None, force_general=False):
        if x.ndim == 4 and self.combine_dims:
            x = x.reshape(x.shape[0], x.shape[1], x.shape[2] * x.shape[3])

        lead = x.shape[:-1]
        K = x.shape[-1]
        assert K == self.input_size, (K, self.input_size)
        N = self.n_neurons
        M = 1
        for d in lead:
            M *= int(d)
        out_dtype = x.dtype if out_dtype is None else out_dtype

        x2 = x.reshape(M, K)

        w_bytes = self._k_pad * self._n_pad * self._w_prepared.dtype.itemsize
        use_resident = (not force_general) and (w_bytes <= self._W_RESIDENT_BYTES)
        if use_resident:
            out = self._call_resident(x2, M, K, N, out_dtype)
        else:
            out = self._call_tiled(x2, M, K, N, out_dtype)
        return out.reshape(*lead, N)

    # -------------------------------------------------- weight-resident path --
    def _call_resident(self, x2, M, K, N, out_dtype):
        K_pad, N_pad = self._k_pad, self._n_pad
        x_bytes = x2.dtype.itemsize
        o_bytes = jnp.dtype(out_dtype).itemsize
        w_bytes = self._w_prepared.dtype.itemsize

        # Per-M-row double-buffered footprint (x tile + out tile).
        per_row = 2 * (K_pad * x_bytes + N_pad * o_bytes)
        tm_cap = max(8, (self._XO_BUDGET_BYTES // per_row) // 8 * 8)
        TM = min(512, tm_cap, _round_up(M, 8))
        # v7x megacore: aim for >= 2 parallel M tiles when there's enough work.
        if M > 8 and _round_up(M, TM) // TM < 2:
            TM = max(8, _round_up(-(-M // 2), 8))
        M_pad = _round_up(M, TM)

        # Skip the pad pass when already aligned; keep x in its own dtype
        # (cast to bf16 happens in-kernel, hidden under the MXU).
        if M_pad == M and K_pad == K:
            x_p = x2
        else:
            x_p = jnp.pad(x2, ((0, M_pad - M), (0, K_pad - K)))

        in_specs = [
            pl.BlockSpec((TM, K_pad), lambda i: (i, 0)),
            pl.BlockSpec((K_pad, N_pad), lambda i: (0, 0)),   # resident weight
        ]
        inputs = [x_p, self._w_prepared]
        if self.has_bias:
            in_specs.append(pl.BlockSpec((1, N_pad), lambda i: (0, 0)))
            inputs.append(self._b_prepared)

        work = (2 * TM * K_pad * x_bytes + 2 * K_pad * N_pad * w_bytes
                + 2 * TM * N_pad * o_bytes + 2 * N_pad * 4)
        vmem_limit = int(min(48 << 20, max(work + (8 << 20), 32 << 20)))

        out = pl.pallas_call(
            functools.partial(_resident_kernel, has_bias=self.has_bias),
            out_shape=jax.ShapeDtypeStruct((M_pad, N_pad), out_dtype),
            grid_spec=pltpu.PrefetchScalarGridSpec(
                num_scalar_prefetch=0,
                grid=(M_pad // TM,),
                in_specs=in_specs,
                out_specs=pl.BlockSpec((TM, N_pad), lambda i: (i, 0)),
            ),
            compiler_params=pltpu.CompilerParams(
                dimension_semantics=("parallel",),
                vmem_limit_bytes=vmem_limit),
        )(*inputs)
        return out[:M, :N]

    # ------------------------------------------------------ general 3-D grid --
    def _call_tiled(self, x2, M, K, N, out_dtype):
        K_pad, N_pad = self._k_pad, self._n_pad
        c_bytes = self._w_prepared.dtype.itemsize
        o_bytes = jnp.dtype(out_dtype).itemsize

        # Tiles are 128-multiples that exactly divide the pre-padded weight, so
        # the weight prepared in __init__ is reused without any per-call re-pad.
        TN = next(c for c in (512, 384, 256, 128) if N_pad % c == 0)
        TK = next(c for c in (1024, 768, 512, 384, 256, 128) if K_pad % c == 0)
        TM = min(512, _round_up(M, 8))
        if M > 8 and (_round_up(M, TM) // TM) * (N_pad // TN) < 2:
            TM = max(8, _round_up(-(-M // 2), 8))
        M_pad = _round_up(M, TM)

        # x is re-streamed N_pad//TN times -> pre-cast once to the compute dtype.
        x_p = x2
        if M_pad != M or K_pad != K:
            x_p = jnp.pad(x_p, ((0, M_pad - M), (0, K_pad - K)))
        x_p = x_p.astype(self._w_prepared.dtype)

        in_specs = [
            pl.BlockSpec((TM, TK), lambda i, j, k: (i, k)),
            pl.BlockSpec((TK, TN), lambda i, j, k: (k, j)),
        ]
        inputs = [x_p, self._w_prepared]
        if self.has_bias:
            in_specs.append(pl.BlockSpec((1, TN), lambda i, j, k: (0, j)))
            inputs.append(self._b_prepared)

        work = (2 * TM * TK * c_bytes + 2 * TK * TN * c_bytes
                + 2 * TM * TN * o_bytes + TM * TN * 4 + 2 * TN * 4)
        vmem_limit = int(min(48 << 20, max(work + (8 << 20), 32 << 20)))

        out = pl.pallas_call(
            functools.partial(_tiled_kernel, has_bias=self.has_bias),
            out_shape=jax.ShapeDtypeStruct((M_pad, N_pad), out_dtype),
            grid_spec=pltpu.PrefetchScalarGridSpec(
                num_scalar_prefetch=0,
                grid=(M_pad // TM, N_pad // TN, K_pad // TK),
                in_specs=in_specs,
                out_specs=pl.BlockSpec((TM, TN), lambda i, j, k: (i, j)),
                scratch_shapes=[pltpu.VMEM((TM, TN), jnp.float32)],
            ),
            compiler_params=pltpu.CompilerParams(
                dimension_semantics=("parallel", "parallel", "arbitrary"),
                vmem_limit_bytes=vmem_limit),
        )(*inputs)
        return out[:M, :N]


# ---------------------------------------------------------------- reference --

def _reference(x, weight, bias, combine_dims):
    """Pure-JAX f32 reference mirroring the PyTorch forward."""
    if x.ndim == 4 and combine_dims:
        x = x.reshape(x.shape[0], x.shape[1], x.shape[2] * x.shape[3])
    y = jnp.einsum("...k,nk->...n", x, weight,
                   precision=jax.lax.Precision.HIGHEST)
    return y + bias


if __name__ == "__main__":
    key = jax.random.PRNGKey(0)
    k1, k2, k3, k4, k5 = jax.random.split(key, 5)

    # --- 3-D input: (batch, time, features) -> (batch, time, n_neurons) ---
    B, T, D_in, N = 2, 8, 32, 64
    x = jax.random.normal(k1, (B, T, D_in), dtype=jnp.float32)
    lin = LinearPallas(n_neurons=N, input_size=D_in, bias=True, key=k2)
    out = jax.block_until_ready(lin(x))
    ref = _reference(x, lin.weight, lin.bias, combine_dims=False)
    assert out.shape == (B, T, N), out.shape
    # bf16 operands + f32 accumulation -> relaxed tolerance vs f32 reference.
    assert jnp.allclose(out, ref, atol=2e-2, rtol=2e-2), "mismatch (3-D resident)"

    # Same layer through the general 3-D-grid fallback kernel (compile check).
    out_g = jax.block_until_ready(lin(x, force_general=True))
    assert jnp.allclose(out_g, ref, atol=2e-2, rtol=2e-2), "mismatch (3-D tiled)"

    # --- 4-D input with combine_dims=True: (B, T, d2, d3) ---
    x4 = jax.random.normal(k3, (2, 4, 16, 16), dtype=jnp.float32)
    lin4 = LinearPallas(n_neurons=32, input_shape=(2, 4, 16, 16),
                        combine_dims=True, bias=True, key=k4)
    out4 = jax.block_until_ready(lin4(x4))
    ref4 = _reference(x4, lin4.weight, lin4.bias, combine_dims=True)
    assert out4.shape == (2, 4, 32), out4.shape
    assert jnp.allclose(out4, ref4, atol=2e-2, rtol=2e-2), "mismatch (4-D case)"

    # --- bias=False path (no bias input is allocated or DMA'd) ---
    lin_nb = LinearPallas(n_neurons=N, input_size=D_in, bias=False, key=k5)
    out_nb = jax.block_until_ready(lin_nb(x))
    ref_nb = _reference(x, lin_nb.weight, jnp.zeros((N,), jnp.float32),
                        combine_dims=False)
    assert jnp.allclose(out_nb, ref_nb, atol=2e-2, rtol=2e-2), "mismatch (no-bias)"

    print("KERNEL_OK")
</pallas_src>

<mosaic_0001>
module attributes {stable_mosaic.version = 11 : i64} {
  func.func @_resident_kernel(%arg0: i32, %arg1: memref<8x128xf32, #tpu.memory_space<vmem>>, %arg2: memref<128x128xbf16, #tpu.memory_space<vmem>>, %arg3: memref<1x128xf32, #tpu.memory_space<vmem>>, %arg4: memref<8x128xf32, #tpu.memory_space<vmem>>) attributes {dimension_semantics = [#tpu.dimension_semantics<parallel>], iteration_bounds = array<i64: 2>, scalar_prefetch = 0 : i64, scratch_operands = 0 : i64, tpu.core_type = #tpu.core_type<tc>, window_params = [{transform_indices = @transform_0, window_bounds = array<i64: 8, 128>}, {pipeline_mode = #tpu.pipeline_mode<synchronous>, transform_indices = @transform_1, window_bounds = array<i64: 128, 128>}, {pipeline_mode = #tpu.pipeline_mode<synchronous>, transform_indices = @transform_2, window_bounds = array<i64: 1, 128>}, {transform_indices = @transform_3, window_bounds = array<i64: 8, 128>}]} {
    %c0 = arith.constant 0 : index
    %c0_0 = arith.constant 0 : index
    %0 = vector.load %arg1[%c0, %c0_0] : memref<8x128xf32, #tpu.memory_space<vmem>>, vector<8x128xf32>
    %1 = arith.truncf %0 : vector<8x128xf32> to vector<8x128xbf16>
    %c0_1 = arith.constant 0 : index
    %c0_2 = arith.constant 0 : index
    %2 = vector.load %arg2[%c0_1, %c0_2] : memref<128x128xbf16, #tpu.memory_space<vmem>>, vector<128x128xbf16>
    %cst = arith.constant dense<0.000000e+00> : vector<8x128xf32>
    %3 = tpu.matmul %1, %2, %cst {dimension_numbers = #tpu.dot_dimension_numbers<[1], [0], [0], [1], [0, 0, 1, 1], [], []>} : vector<8x128xbf16>, vector<128x128xbf16>, vector<8x128xf32> -> vector<8x128xf32>
    %c0_3 = arith.constant 0 : index
    %c0_4 = arith.constant 0 : index
    %4 = vector.load %arg3[%c0_3, %c0_4] : memref<1x128xf32, #tpu.memory_space<vmem>>, vector<1x128xf32>
    %5 = vector.broadcast %4 : vector<1x128xf32> to vector<8x128xf32>
    %6 = arith.addf %3, %5 : vector<8x128xf32>
    %c0_5 = arith.constant 0 : index
    %c0_6 = arith.constant 0 : index
    %7 = vector.load %arg4[%c0_5, %c0_6] : memref<8x128xf32, #tpu.memory_space<vmem>>, vector<8x128xf32>
    tpu.vector_store %arg4[%c0_5, %c0_6], %6 {strides = array<i32>} : memref<8x128xf32, #tpu.memory_space<vmem>>, vector<8x128xf32>,
    return
  }
  func.func @transform_0(%arg0: i32) -> (i32, i32) {
    %c0_i32 = arith.constant 0 : i32
    %c0_i32_0 = arith.constant 0 : i32
    return %arg0, %c0_i32 : i32, i32
  }
  func.func @transform_1(%arg0: i32) -> (i32, i32) {
    %c0_i32 = arith.constant 0 : i32
    %c0_i32_0 = arith.constant 0 : i32
    %c0_i32_1 = arith.constant 0 : i32
    return %c0_i32, %c0_i32_0 : i32, i32
  }
  func.func @transform_2(%arg0: i32) -> (i32, i32) {
    %c0_i32 = arith.constant 0 : i32
    %c0_i32_0 = arith.constant 0 : i32
    %c0_i32_1 = arith.constant 0 : i32
    return %c0_i32, %c0_i32_0 : i32, i32
  }
  func.func @transform_3(%arg0: i32) -> (i32, i32) {
    %c0_i32 = arith.constant 0 : i32
    %c0_i32_0 = arith.constant 0 : i32
    return %arg0, %c0_i32 : i32, i32
  }
}

</mosaic_0001>

<llo_original>
// kernel: tpu_custom_call.1
$region0: #{tpu_custom_call.1}
  #allocation0 [shape = 'u32[]', space=smem, size = 0x4, offset = 0x4, fixed_abs, tag = 'smem constant byte address 0x4 - core index']
  #allocation1 [shape = 'u32[72,128]{1,0:T(1,128)}', space=vmem, size = 0x9000, scoped, tag = 'internal scratch']
  %s0 = inlined_call_operand.hbm [shape: f32[16,128], index: 0, kind: input, shape index: {}]
  %s1 = inlined_call_operand.hbm [shape: bf16[128,128], index: 1, kind: input, shape index: {}]
  %s2 = inlined_call_operand.vmem [shape: f32[1,128], index: 2, kind: input, shape index: {}]
  %s3 = inlined_call_operand.hbm [shape: f32[16,128], index: 3, kind: output, shape index: {}]
  %s4 = sld [smem:[#allocation0]]
  $region53: #{tpu_custom_call.1} parent=0
    _
  %s6 = ssub.s32 1, %s4
  %s7 = scalar_select 0, %s6, %s4
  $region1: #{tpu_custom_call.1} parent=0
    #allocation2 [shape = 'u8[8192]{0}', space=vmem, size = 0x2000, scoped, tag = 'input window, operand 0']
    #allocation3 [shape = 's32[2]{0}', space=sflag, size = 0x8, scoped, tag = 'scoped memory for tpu_custom_call.1']
    #allocation4 [shape = 's32[2]{0}', space=sflag, size = 0x8, scoped, tag = 'scoped memory for tpu_custom_call.1']
    #allocation5 [shape = 'u8[32768]{0}', space=vmem, size = 0x8000, scoped, tag = 'input window, operand 1, single buffered']
    #allocation6 [shape = 's32[1]{0}', space=sflag, size = 0x4, scoped, tag = 'scoped memory for tpu_custom_call.1']
    #allocation7 [shape = 'u8[8192]{0}', space=vmem, size = 0x2000, scoped, tag = 'output window, operand 0']
    %8 = vsyncpa [#allocation3], 0
    %s9 = scalar_lea.sflag [#allocation3], 1
    %10 = vsyncpa %s9, 0
    %11 = vsyncpa [#allocation6], 0
    %12 = vsyncpa [#allocation4], 0
    %s13 = scalar_lea.sflag [#allocation4], 1
    %14 = vsyncpa %s13, 0
    loop: start=0, step=1, limit=4
    $region2: #{tpu_custom_call.1} parent=1 // loop_pre_header
      _
    $region3: #{tpu_custom_call.1} parent=1 // loop_header
      %s16 = sphi 0, %s20
      %p17 = scmp.ge.s32.totalorder %s16, 4
      %s26 = sphi 0, %s28
      %s29 = sphi 0, %s26
      %s30 = sphi 0, %s29
      %s46 = sphi 0, %s30
      %s50 = sphi 0, %s50
      %s52 = sphi 0, %s50
      %s53 = sphi 0, %s52
      %s67 = sphi 0, %s53
      %s71 = sphi 0, %s71
      %s73 = sphi 0, %s71
      %s74 = sphi 0, %s73
      %s88 = sphi 0, %s74
      %s94 = sphi 0, %s96
      %s97 = sphi 0, %s94
      %s98 = sphi 0, %s97
      %s114 = sphi 0, %s98
    $region4: #{tpu_custom_call.1} parent=1 // loop_header_branch
      %19 = sbr.rel (%p17) target = $region8
    $region5: #{tpu_custom_call.1} parent=1 // loop_body
      %s21 = ssub.s32 %s16, 1
      %s22 = ssub.s32 %s16, 2
      %s23 = sadd.s32 %s16, 1
      %s24 = ssub.s32 %s16, %s23
      %p25 = scmp.eq.s32.totalorder %s24, 0
      %s27 = sadd.s32 %s26, 1
      %s28 = scalar_select %p25, %s26, %s27
      %p31 = pneg %p25
      %p32 = scmp.eq.s32.totalorder %s16, 1
      %p33 = por %p31, %p32
      %p34 = scmp.ne.s32.totalorder %s26, %s29
      %p35 = scmp.eq.s32.totalorder %s16, 0
      %p36 = por %p34, %p35
      %p37 = scmp.ne.s32.totalorder %s26, %s29
      %p38 = scmp.eq.s32.totalorder %s21, 1
      %p39 = por %p37, %p38
      %p40 = scmp.ne.s32.totalorder %s29, %s30
      %p41 = scmp.eq.s32.totalorder %s21, 0
      %p42 = por %p40, %p41
      %p43 = scmp.ne.s32.totalorder %s29, %s30
      %p44 = scmp.eq.s32.totalorder %s22, 1
      %p45 = por %p43, %p44
      %p47 = scmp.ne.s32.totalorder %s30, %s46
      %p48 = scmp.eq.s32.totalorder %s22, 0
      %p49 = por %p47, %p48
      %s51 = sadd.s32 %s50, 1
      %p54 = scmp.eq.s32.totalorder %s16, 1
      %p55 = scmp.ne.s32.totalorder %s50, %s52
      %p56 = scmp.eq.s32.totalorder %s16, 0
      %p57 = por %p55, %p56
      %p58 = scmp.ne.s32.totalorder %s50, %s52
      %p59 = scmp.eq.s32.totalorder %s21, 1
      %p60 = por %p58, %p59
      %p61 = scmp.ne.s32.totalorder %s52, %s53
      %p62 = scmp.eq.s32.totalorder %s21, 0
      %p63 = por %p61, %p62
      %p64 = scmp.ne.s32.totalorder %s52, %s53
      %p65 = scmp.eq.s32.totalorder %s22, 1
      %p66 = por %p64, %p65
      %p68 = scmp.ne.s32.totalorder %s53, %s67
      %p69 = scmp.eq.s32.totalorder %s22, 0
      %p70 = por %p68, %p69
      %s72 = sadd.s32 %s71, 1
      %p75 = scmp.eq.s32.totalorder %s16, 1
      %p76 = scmp.ne.s32.totalorder %s71, %s73
      %p77 = scmp.eq.s32.totalorder %s16, 0
      %p78 = por %p76, %p77
      %p79 = scmp.ne.s32.totalorder %s71, %s73
      %p80 = scmp.eq.s32.totalorder %s21, 1
      %p81 = por %p79, %p80
      %p82 = scmp.ne.s32.totalorder %s73, %s74
      %p83 = scmp.eq.s32.totalorder %s21, 0
      %p84 = por %p82, %p83
      %p85 = scmp.ne.s32.totalorder %s73, %s74
      %p86 = scmp.eq.s32.totalorder %s22, 1
      %p87 = por %p85, %p86
      %p89 = scmp.ne.s32.totalorder %s74, %s88
      %p90 = scmp.eq.s32.totalorder %s22, 0
      %p91 = por %p89, %p90
      %s92 = ssub.s32 %s16, %s23
      %p93 = scmp.eq.s32.totalorder %s92, 0
      %s95 = sadd.s32 %s94, 1
      %s96 = scalar_select %p93, %s94, %s95
      %p99 = pneg %p93
      %p100 = scmp.eq.s32.totalorder %s16, 1
      %p101 = por %p99, %p100
      %p102 = scmp.ne.s32.totalorder %s94, %s97
      %p103 = scmp.eq.s32.totalorder %s16, 0
      %p104 = por %p102, %p103
      %p105 = scmp.ne.s32.totalorder %s94, %s97
      %p106 = scmp.eq.s32.totalorder %s21, 1
      %p107 = por %p105, %p106
      %p108 = scmp.ne.s32.totalorder %s97, %s98
      %p109 = scmp.eq.s32.totalorder %s21, 0
      %p110 = por %p108, %p109
      %p111 = scmp.ne.s32.totalorder %s97, %s98
      %p112 = scmp.eq.s32.totalorder %s22, 1
      %p113 = por %p111, %p112
      %p115 = scmp.ne.s32.totalorder %s98, %s114
      %p116 = scmp.eq.s32.totalorder %s22, 0
      %p117 = por %p115, %p116
      %p118 = scmp.le.s32.totalorder 1, %s16
      %p119 = scmp.lt.s32.totalorder %s16, 3
      %p120 = pnand %p118, %p119
      %p121 = pneg %p120
      // Predicated region
      $region9: #{tpu_custom_call.1} parent=5 // pred_check
        _
      $region10: #{tpu_custom_call.1} parent=5 // pred_check_branch
        %123 = sbr.rel (%p120) target = $region12
      $region11: #{tpu_custom_call.1} parent=5 // pred_region
        %s124 = ssub.s32 %s16, 1
        // Predicated region
        $region13: #{tpu_custom_call.1} parent=11 // pred_check
          %p125 = pneg %p63
        $region14: #{tpu_custom_call.1} parent=11 // pred_check_branch
          %127 = sbr.rel (%p125) target = $region16
        $region15: #{tpu_custom_call.1} parent=11 // pred_region
          %129 = vsyncadd [#allocation6], 0
          %s130 = sshll.u32 %s1, 4
          %s131 = int_to_ptr.hbm [resolvable:$true] %s130
          %s132 = sshll.u32 [#allocation5], 4
          %s133 = int_to_ptr.vmem [resolvable:$true] %s132
          %138 = dma.hbm_to_vmem [thread:$0]  %s131, 1024, %s133, [#allocation6], 64, 64, 4
        $region16: #{tpu_custom_call.1} parent=11 // pred_fallthru
          _
        // Predicated region
        $region17: #{tpu_custom_call.1} parent=11 // pred_check
          %p139 = pneg %p84
        $region18: #{tpu_custom_call.1} parent=11 // pred_check_branch
          %141 = sbr.rel (%p139) target = $region20
        $region19: #{tpu_custom_call.1} parent=11 // pred_region
          _
        $region20: #{tpu_custom_call.1} parent=11 // pred_fallthru
          _
      $region12: #{tpu_custom_call.1} parent=5 // pred_fallthru
        _
      %p142 = scmp.lt.s32.totalorder %s16, 2
      // Predicated region
      $region21: #{tpu_custom_call.1} parent=5 // pred_check
        %p143 = pneg %p142
      $region22: #{tpu_custom_call.1} parent=5 // pred_check_branch
        %145 = sbr.rel (%p143) target = $region24
      $region23: #{tpu_custom_call.1} parent=5 // pred_region
        // Predicated region
        $region25: #{tpu_custom_call.1} parent=23 // pred_check
          %p146 = pneg %p36
        $region26: #{tpu_custom_call.1} parent=23 // pred_check_branch
          %148 = sbr.rel (%p146) target = $region28
        $region27: #{tpu_custom_call.1} parent=23 // pred_region
          %s149 = sand.u32 %s26, 1
          %s150 = scalar_lea.sflag [#allocation3], %s149
          %s151 = sand.u32 %s26, 1
          %s152 = smul.addr %s151, 8
          %s153 = scalar_lea.vmem [#allocation2], %s152
          %155 = vsyncadd %s150, 0
          %s156 = smul.addr %s16, 8
          %s157 = scalar_lea.hbm %s0, %s156
          %s159 = sshll.u32 %s157, 4
          %s160 = int_to_ptr.hbm [resolvable:$true] %s159
          %s161 = sshll.u32 %s153, 4
          %s162 = int_to_ptr.vmem [resolvable:$true] %s161
          %164 = dma.hbm_to_vmem [thread:$0]  %s160, 128, %s162, %s150
        $region28: #{tpu_custom_call.1} parent=23 // pred_fallthru
          _
      $region24: #{tpu_custom_call.1} parent=5 // pred_fallthru
        _
      %p165 = scmp.le.s32.totalorder 1, %s16
      %p166 = scmp.lt.s32.totalorder %s16, 3
      %p167 = pnand %p165, %p166
      %p168 = pneg %p167
      // Predicated region
      $region29: #{tpu_custom_call.1} parent=5 // pred_check
        _
      $region30: #{tpu_custom_call.1} parent=5 // pred_check_branch
        %170 = sbr.rel (%p167) target = $region32
      $region31: #{tpu_custom_call.1} parent=5 // pred_region
        %s171 = ssub.s32 %s16, 1
        %s172 = sand.u32 %s29, 1
        %s173 = scalar_lea.sflag [#allocation3], %s172
        %s174 = sand.u32 %s29, 1
        %s175 = smul.addr %s174, 8
        %s176 = scalar_lea.vmem [#allocation2], %s175
        // Predicated region
        $region33: #{tpu_custom_call.1} parent=31 // pred_check
          %p177 = pneg %p42
        $region34: #{tpu_custom_call.1} parent=31 // pred_check_branch
          %179 = sbr.rel (%p177) target = $region36
        $region35: #{tpu_custom_call.1} parent=31 // pred_region
          %181 = dma.done %s173, 128
        $region36: #{tpu_custom_call.1} parent=31 // pred_fallthru
          _
        // Predicated region
        $region37: #{tpu_custom_call.1} parent=31 // pred_check
          %p182 = pneg %p63
        $region38: #{tpu_custom_call.1} parent=31 // pred_check_branch
          %184 = sbr.rel (%p182) target = $region40
        $region39: #{tpu_custom_call.1} parent=31 // pred_region
          %186 = dma.done [#allocation6], 1024
        $region40: #{tpu_custom_call.1} parent=31 // pred_fallthru
          _
        %s187 = sand.u32 %s29, 1
        %s188 = scalar_lea.sflag [#allocation3], %s187
        %s189 = sand.u32 %s29, 1
        %s190 = smul.addr %s189, 8
        %s191 = scalar_lea.vmem [#allocation2], %s190
        %p192 = pneg %p42
        %p193 = pneg %p39
        %p194 = pneg %p63
        %p195 = pneg %p60
        %p196 = pneg %p84
        %p197 = pneg %p81
        %p198 = pneg %p110
        %p199 = pneg %p107
        %s200 = sand.u32 %s97, 1
        %s201 = scalar_lea.sflag [#allocation4], %s200
        %s202 = sand.u32 %s97, 1
        %s203 = smul.addr %s202, 8
        %s204 = scalar_lea.vmem [#allocation7], %s203
        %v205 = vld [vmem:[%s176] sm:$0xff]
        %v206 = vpack.c.bf16 %v205, %v205
        %v207 = vld [vmem:[#allocation5] sm:$0xf]
        %v208 = vld [vmem:[#allocation5 + $0x4] sm:$0xf]
        %v209 = vld [vmem:[#allocation5 + $0x8] sm:$0xf]
        %v210 = vld [vmem:[#allocation5 + $0xc] sm:$0xf]
        %v211 = vld [vmem:[#allocation5 + $0x10] sm:$0xf]
        %v212 = vld [vmem:[#allocation5 + $0x14] sm:$0xf]
        %v213 = vld [vmem:[#allocation5 + $0x18] sm:$0xf]
        %v214 = vld [vmem:[#allocation5 + $0x1c] sm:$0xf]
        %v215 = vld [vmem:[#allocation5 + $0x20] sm:$0xf]
        %v216 = vld [vmem:[#allocation5 + $0x24] sm:$0xf]
        %v217 = vld [vmem:[#allocation5 + $0x28] sm:$0xf]
        %v218 = vld [vmem:[#allocation5 + $0x2c] sm:$0xf]
        %v219 = vld [vmem:[#allocation5 + $0x30] sm:$0xf]
        %v220 = vld [vmem:[#allocation5 + $0x34] sm:$0xf]
        %v221 = vld [vmem:[#allocation5 + $0x38] sm:$0xf]
        %v222 = vld [vmem:[#allocation5 + $0x3c] sm:$0xf]
        %v223 = vld [vmem:[%s2] sm:$0x1]
        %v225 = vperm.slane %v223, 0
        %v243 = vunpack.c.l.b16 %v207
        %v244 = vunpack.c.l.b16 %v208
        %v245 = vunpack.c.l.b16 %v209
        %v246 = vunpack.c.l.b16 %v210
        %v247 = vunpack.c.l.b16 %v211
        %v248 = vunpack.c.l.b16 %v212
        %v249 = vunpack.c.l.b16 %v213
        %v250 = vunpack.c.l.b16 %v214
        %v251 = vunpack.c.l.b16 %v215
        %v252 = vunpack.c.l.b16 %v216
        %v253 = vunpack.c.l.b16 %v217
        %v254 = vunpack.c.l.b16 %v218
        %v255 = vunpack.c.l.b16 %v219
        %v256 = vunpack.c.l.b16 %v220
        %v257 = vunpack.c.l.b16 %v221
        %v258 = vunpack.c.l.b16 %v222
        %v259 = vpack.c.b16 %v244, %v243
        %v260 = vpack.c.b16 %v246, %v245
        %v261 = vpack.c.b16 %v248, %v247
        %v262 = vpack.c.b16 %v250, %v249
        %v263 = vpack.c.b16 %v252, %v251
        %v264 = vpack.c.b16 %v254, %v253
        %v265 = vpack.c.b16 %v256, %v255
        %v266 = vpack.c.b16 %v258, %v257
        %275 = vmatpush.bf16.msra.mxu0 %v266
        %276 = vmatpush.bf16.msra.mxu0 %v265
        %277 = vmatpush.bf16.msra.mxu0 %v264
        %278 = vmatpush.bf16.msra.mxu0 %v263
        %279 = vmatpush.bf16.msra.mxu0 %v262
        %280 = vmatpush.bf16.msra.mxu0 %v261
        %281 = vmatpush.bf16.msra.mxu0 %v260
        %282 = vmatpush.bf16.msra.mxu0 %v259
        %283 = vmatmul.bf16.gmra.mxu0 %v206
        %v284 = vpop.f32.mrf.mxu0
        %v285 = vadd.f32 %v225, %v284
        %v286 = vpop.f32.mrf.mxu0
        %287 = vdwg.mxu0
        %288 = vst [vmem:[%s204] sm:$0xff] %v285
        %s289 = sand.u32 %s97, 1
        %s290 = scalar_lea.sflag [#allocation4], %s289
        %s291 = sand.u32 %s97, 1
        %s292 = smul.addr %s291, 8
        %s293 = scalar_lea.vmem [#allocation7], %s292
        // Predicated region
        $region41: #{tpu_custom_call.1} parent=31 // pred_check
          %p294 = pneg %p107
        $region42: #{tpu_custom_call.1} parent=31 // pred_check_branch
          %296 = sbr.rel (%p294) target = $region44
        $region43: #{tpu_custom_call.1} parent=31 // pred_region
          %298 = vsyncadd %s290, 0
          %s299 = smul.addr %s21, 8
          %s300 = scalar_lea.hbm %s3, %s299
          %s302 = sshll.u32 %s293, 4
          %s303 = int_to_ptr.vmem [resolvable:$true] %s302
          %s304 = sshll.u32 %s300, 4
          %s305 = int_to_ptr.hbm [resolvable:$true] %s304
          %307 = dma.vmem_to_hbm [thread:$0]  %s303, 128, %s305, %s290
        $region44: #{tpu_custom_call.1} parent=31 // pred_fallthru
          _
      $region32: #{tpu_custom_call.1} parent=5 // pred_fallthru
        _
      %p308 = scmp.le.s32.totalorder 2, %s16
      // Predicated region
      $region45: #{tpu_custom_call.1} parent=5 // pred_check
        %p309 = pneg %p308
      $region46: #{tpu_custom_call.1} parent=5 // pred_check_branch
        %311 = sbr.rel (%p309) target = $region48
      $region47: #{tpu_custom_call.1} parent=5 // pred_region
        %s312 = ssub.s32 %s16, 2
        // Predicated region
        $region49: #{tpu_custom_call.1} parent=47 // pred_check
          %p313 = pneg %p113
        $region50: #{tpu_custom_call.1} parent=47 // pred_check_branch
          %315 = sbr.rel (%p313) target = $region52
        $region51: #{tpu_custom_call.1} parent=47 // pred_region
          %s316 = sand.u32 %s98, 1
          %s317 = scalar_lea.sflag [#allocation4], %s316
          %s318 = sand.u32 %s98, 1
          %s319 = smul.addr %s318, 8
          %s320 = scalar_lea.vmem [#allocation7], %s319
          %322 = dma.done %s317, 128
        $region52: #{tpu_custom_call.1} parent=47 // pred_fallthru
          _
      $region48: #{tpu_custom_call.1} parent=5 // pred_fallthru
        _
    $region6: #{tpu_custom_call.1} parent=1 // loop_footer
      %s20 = sadd.s32 1, %s16
    $region7: #{tpu_custom_call.1} parent=1 // loop_footer_branch
      %15 = sbr.rel target = $region3
    $region8: #{tpu_custom_call.1} parent=1 // loop_exit
      _
    %323 = vsyncpa [#allocation3], 1
    %s324 = scalar_lea.sflag [#allocation3], 1
    %325 = vsyncpa %s324, 1
    %326 = vsyncpa [#allocation6], 1
    %327 = vsyncpa [#allocation4], 1
    %s328 = scalar_lea.sflag [#allocation4], 1
    %329 = vsyncpa %s328, 1

</llo_original>
